<compile_context>
chip_gen: v5e
topology: v5e:2x2
jax: 0.10.0
libtpu: 0.0.40
codegen_flags: <defaults>
</compile_context>

<pallas_src>
import jax
import jax.numpy as jnp
import numpy as np
from jax.experimental import pallas as pl
from jax.experimental.pallas import tpu as pltpu


def _padding(in_size, out_size, kernel, stride=1):
    return ((out_size - 1) * stride - in_size + kernel) // 2


# --------------------------------------------------------------------------------------
# Kernel: one image-row step of the recurrence; grid axis 0 iterates rows sequentially.
# --------------------------------------------------------------------------------------
def rowlstm_sweep_kernel(x_ref, c0_ref, h0_ref, wx_ref, wh_ref, b_ref,
                         hc_ref, c_sc, h_sc):
    # x_ref : (B, Cin*W)     this row's flat input              (per-row block)
    # c0_ref: (B, H*W)       initial cell state                 (resident)
    # h0_ref: (B, H*W)       initial hidden state               (resident)
    # wx_ref: (Cin*W, 4*GP)  fused banded conv_i_s weight       (resident; gate blocks padded)
    # wh_ref: (H*W,   4*GP)  fused banded conv_s_s weight       (resident)
    # b_ref : (1, 4*GP)      fused bias                         (resident)
    # hc_ref: (B, 2*H*W)     this row's [h || c] output         (per-row, 128-lane dense store)
    # c_sc, h_sc: (B, H*W)   f32 VMEM scratch carrying the recurrent state across rows
    hw = c_sc.shape[-1]
    gp = wx_ref.shape[-1] // 4
    wdt = wx_ref.dtype

    @pl.when(pl.program_id(0) == 0)
    def _():
        c_sc[...] = c0_ref[...].astype(jnp.float32)
        h_sc[...] = h0_ref[...].astype(jnp.float32)

    x = x_ref[...].astype(wdt)
    h = h_sc[...].astype(wdt)
    c_prev = c_sc[...]

    # Two MXU pushes accumulating into f32; no lane-axis concat of x and h.
    gates = (jnp.dot(x, wx_ref[...], preferred_element_type=jnp.float32)
             + jnp.dot(h, wh_ref[...], preferred_element_type=jnp.float32)
             + b_ref[...].astype(jnp.float32))
    gates = jax.nn.sigmoid(gates)          # 'g' goes through sigmoid too (as in the module)

    # Gate blocks are 128-lane padded: slices start at lane 0 / GP / 2GP / 3GP (vreg-aligned).
    gi = gates[:, 0 * gp:0 * gp + hw]
    gg = gates[:, 1 * gp:1 * gp + hw]
    gf = gates[:, 2 * gp:2 * gp + hw]
    go = gates[:, 3 * gp:3 * gp + hw]

    c_new = gf * c_prev + gi * gg
    h_new = go * jnp.tanh(c_new)

    c_sc[...] = c_new
    h_sc[...] = h_new
    # Single lane-dense (B, 2*H*W) store: [h || c].
    hc_ref[...] = jnp.concatenate([h_new, c_new], axis=-1).astype(hc_ref.dtype)


# --------------------------------------------------------------------------------------
# One-time parameter preparation: fold both k=3 convs into dense banded matrices,
# gate blocks zero-padded to 128 columns so in-kernel gate slices are vreg-aligned.
# --------------------------------------------------------------------------------------
def build_fused_params(params, hidden_dims, image_size, channel_in,
                       weight_dtype=jnp.float32):
    """Returns {'w_x': (Cin*W, 4*GP), 'w_h': (H*W, 4*GP), 'b': (1, 4*GP), 'gate_pad': GP}."""
    assert channel_in == hidden_dims, "module only supports channel_in == hidden_dims"
    H, W = hidden_dims, image_size
    HW = H * W
    GP = ((HW + 127) // 128) * 128       # gate block padded up to a 128-lane multiple

    w_is = jnp.asarray(params["w_is"], jnp.float32)   # (4H, H, 3)   conv_i_s (MaskedConv1d 'B')
    w_ss = jnp.asarray(params["w_ss"], jnp.float32)   # (4H, Cin, 3) conv_s_s
    b_is = jnp.asarray(params["b_is"], jnp.float32)   # (4H,)
    b_ss = jnp.asarray(params["b_ss"], jnp.float32)   # (4H,)

    # Enforce mask 'B' for kernel size 3: zero the look-ahead tap (k=2), regardless of caller.
    w_is = w_is.at[:, :, 2].set(0.0)

    def conv_as_dense(w):
        # w: (O, C, 3), cross-correlation with padding=1.
        # Returns M: (C*W, O*W) with out[b, o*W+w] = sum_{c,w'} in[b, c*W+w'] * M[c*W+w', o*W+w]
        O, C, _ = w.shape
        wp = jnp.arange(W)[:, None]            # input position  w'
        wo = jnp.arange(W)[None, :]            # output position w
        k = wp - wo + 1                        # tap index (w' = w + k - 1)
        valid = (k >= 0) & (k <= 2)
        kc = jnp.clip(k, 0, 2)
        band = jnp.where(valid[None, None, :, :], w[:, :, kc], 0.0)   # (O, C, W, W)
        return jnp.transpose(band, (1, 2, 0, 3)).reshape(C * W, O * W)

    def pad_gates(m):
        # m: (..., 4*HW) -> (..., 4*GP); gate g lands at column offset g*GP, pad columns zero.
        out = jnp.zeros(m.shape[:-1] + (4 * GP,), m.dtype)
        for g in range(4):
            out = out.at[..., g * GP:g * GP + HW].set(m[..., g * HW:(g + 1) * HW])
        return out

    w_x = pad_gates(conv_as_dense(w_is))       # acts on `inputs`
    w_h = pad_gates(conv_as_dense(w_ss))       # acts on h_prev
    b = pad_gates(jnp.broadcast_to((b_is + b_ss)[:, None], (4 * H, W)).reshape(1, 4 * HW))

    return {"w_x": w_x.astype(weight_dtype), "w_h": w_h.astype(weight_dtype),
            "b": b.astype(jnp.float32), "gate_pad": GP}


# --------------------------------------------------------------------------------------
# Wrapper: the full row recurrence as ONE pallas_call (grid over rows, resident weights,
# VMEM-carried state).  A single-step, module-equivalent forward is provided below.
# --------------------------------------------------------------------------------------
def row_lstm_sweep(x_rows, states, fused, hidden_dims, image_size, channel_in):
    """x_rows: (R, B, channel_in*image_size); states: (c0, h0) each (B, hidden*image_size).
    Returns (h_all (R, B, H*W), (c_last, h_last))."""
    c0, h0 = states
    R, B, cinw = x_rows.shape
    HW = hidden_dims * image_size
    GP = fused["gate_pad"]

    flops = R * (2 * B * (cinw + HW) * 4 * GP + 8 * B * HW)
    transcendentals = R * B * (4 * GP + HW)
    bytes_accessed = 4 * ((cinw + HW + 1) * 4 * GP + 2 * B * HW + R * B * (cinw + 2 * HW))

    hc_all = pl.pallas_call(
        rowlstm_sweep_kernel,
        out_shape=jax.ShapeDtypeStruct((R, B, 2 * HW), jnp.float32),
        grid_spec=pltpu.PrefetchScalarGridSpec(
            num_scalar_prefetch=0,
            grid=(R,),
            in_specs=[
                pl.BlockSpec((None, B, cinw), lambda r: (r, 0, 0)),   # per-row x
                pl.BlockSpec((B, HW), lambda r: (0, 0)),              # c0   (resident)
                pl.BlockSpec((B, HW), lambda r: (0, 0)),              # h0   (resident)
                pl.BlockSpec((cinw, 4 * GP), lambda r: (0, 0)),       # w_x  (resident)
                pl.BlockSpec((HW, 4 * GP), lambda r: (0, 0)),         # w_h  (resident)
                pl.BlockSpec((1, 4 * GP), lambda r: (0, 0)),          # bias (resident)
            ],
            out_specs=pl.BlockSpec((None, B, 2 * HW), lambda r: (r, 0, 0)),
            scratch_shapes=[pltpu.VMEM((B, HW), jnp.float32),         # c carry
                            pltpu.VMEM((B, HW), jnp.float32)],        # h carry
        ),
        compiler_params=pltpu.CompilerParams(
            dimension_semantics=("arbitrary",)),                      # row recurrence is serial
        cost_estimate=pl.CostEstimate(flops=flops,
                                      transcendentals=transcendentals,
                                      bytes_accessed=bytes_accessed),
    )(x_rows, c0, h0, fused["w_x"], fused["w_h"], fused["b"])

    h_all = hc_all[:, :, :HW]
    c_last = hc_all[-1, :, HW:]
    h_last = hc_all[-1, :, :HW]
    return h_all, (c_last, h_last)


def row_lstm_cell(inputs, states, fused, hidden_dims, image_size, channel_in):
    """Single-step forward with the same interface/semantics as the PyTorch module's forward."""
    h_all, new_state = row_lstm_sweep(inputs[None], states, fused,
                                      hidden_dims, image_size, channel_in)
    return h_all[0], new_state


# --------------------------------------------------------------------------------------
# Pure-JAX reference mirroring the PyTorch forward (lax.conv based).
# --------------------------------------------------------------------------------------
def ref_cell(inputs, c_prev, h_prev, w_is_masked, b_is, w_ss, b_ss, H, W, Cin):
    B = inputs.shape[0]
    x = inputs.reshape(B, Cin, W)
    hp = h_prev.reshape(B, H, W)
    dn_x = jax.lax.conv_dimension_numbers(x.shape, w_is_masked.shape, ('NCH', 'OIH', 'NCH'))
    i_s = jax.lax.conv_general_dilated(x, w_is_masked, (1,), [(1, 1)],
                                       dimension_numbers=dn_x) + b_is[None, :, None]
    dn_h = jax.lax.conv_dimension_numbers(hp.shape, w_ss.shape, ('NCH', 'OIH', 'NCH'))
    s_s = jax.lax.conv_general_dilated(hp, w_ss, (1,), [(1, 1)],
                                       dimension_numbers=dn_h) + b_ss[None, :, None]
    lstm = jax.nn.sigmoid((s_s + i_s).reshape(B, 4 * H * W))
    gi, gg, gf, go = jnp.split(lstm, 4, axis=1)
    c = gf * c_prev + gi * gg
    h = go * jnp.tanh(c)
    return h, c


def ref_sweep(x_rows, c0, h0, w_is_masked, b_is, w_ss, b_ss, H, W, Cin):
    c, h = c0, h0
    hs = []
    for r in range(x_rows.shape[0]):
        h, c = ref_cell(x_rows[r], c, h, w_is_masked, b_is, w_ss, b_ss, H, W, Cin)
        hs.append(h)
    return jnp.stack(hs), c, h


if __name__ == "__main__":
    hidden_dims = 4
    channel_in = 4                       # module requires channel_in == hidden_dims
    image_size = 16
    batch = 8                            # fills one 8-sublane vreg group for the MXU LHS
    num_rows = image_size                # RowLSTM sweeps every image row in ONE pallas_call
    num_units = hidden_dims * image_size
    assert _padding(image_size, image_size, 3) == 1

    key = jax.random.PRNGKey(0)
    k1, k2, k3, k4, k5, k6, k7 = jax.random.split(key, 7)

    x_rows = jax.random.normal(k1, (num_rows, batch, channel_in * image_size), jnp.float32)
    c0 = jax.random.normal(k2, (batch, num_units), jnp.float32)
    h0 = jax.random.normal(k3, (batch, num_units), jnp.float32)

    # PyTorch Conv1d weight layout (out, in, k). w_is is left UNmasked here on purpose:
    # build_fused_params enforces the MaskedConv1d 'B' zeroing itself.
    w_is = 0.1 * jax.random.normal(k4, (4 * hidden_dims, hidden_dims, 3), jnp.float32)
    b_is = 0.1 * jax.random.normal(k5, (4 * hidden_dims,), jnp.float32)
    w_ss = 0.1 * jax.random.normal(k6, (4 * hidden_dims, channel_in, 3), jnp.float32)
    b_ss = 0.1 * jax.random.normal(k7, (4 * hidden_dims,), jnp.float32)

    params = dict(w_is=w_is, b_is=b_is, w_ss=w_ss, b_ss=b_ss)
    fused = build_fused_params(params, hidden_dims, image_size, channel_in)
    # v6e/v7x option: build_fused_params(..., weight_dtype=jnp.bfloat16) halves weight DMA and
    # doubles MXU rate; the 1e-5 parity tolerance below must then be loosened to ~1e-2.

    # Full-image sweep: one pallas_call over all rows, weights resident, state in VMEM scratch.
    h_all, (c_last, h_last) = row_lstm_sweep(x_rows, (c0, h0), fused,
                                             hidden_dims, image_size, channel_in)
    jax.block_until_ready((h_all, c_last, h_last))

    # Single-step, module-equivalent forward (same kernel, R=1).
    h1, (c1, h1b) = row_lstm_cell(x_rows[0], (c0, h0), fused,
                                  hidden_dims, image_size, channel_in)
    jax.block_until_ready((h1, c1))

    # Reference applies the mask 'B' to conv_i_s weights at forward time, like MaskedConv1d.
    w_is_masked = w_is.at[:, :, 2].set(0.0)
    h_ref_all, c_ref_last, h_ref_last = ref_sweep(x_rows, c0, h0, w_is_masked, b_is, w_ss,
                                                  b_ss, hidden_dims, image_size, channel_in)
    np.testing.assert_allclose(np.asarray(h_all), np.asarray(h_ref_all), rtol=1e-5, atol=1e-5)
    np.testing.assert_allclose(np.asarray(c_last), np.asarray(c_ref_last), rtol=1e-5, atol=1e-5)
    np.testing.assert_allclose(np.asarray(h_last), np.asarray(h_ref_last), rtol=1e-5, atol=1e-5)

    h_ref1, c_ref1 = ref_cell(x_rows[0], c0, h0, w_is_masked, b_is, w_ss, b_ss,
                              hidden_dims, image_size, channel_in)
    np.testing.assert_allclose(np.asarray(h1), np.asarray(h_ref1), rtol=1e-5, atol=1e-5)
    np.testing.assert_allclose(np.asarray(c1), np.asarray(c_ref1), rtol=1e-5, atol=1e-5)

    print("KERNEL_OK")
</pallas_src>

<mosaic_0001>
module attributes {stable_mosaic.version = 11 : i64} {
  func.func @rowlstm_sweep_kernel(%arg0: i32, %arg1: memref<1x8x64xf32, #tpu.memory_space<vmem>>, %arg2: memref<8x64xf32, #tpu.memory_space<vmem>>, %arg3: memref<8x64xf32, #tpu.memory_space<vmem>>, %arg4: memref<64x512xf32, #tpu.memory_space<vmem>>, %arg5: memref<64x512xf32, #tpu.memory_space<vmem>>, %arg6: memref<1x512xf32, #tpu.memory_space<vmem>>, %arg7: memref<1x8x128xf32, #tpu.memory_space<vmem>>, %arg8: memref<8x64xf32, #tpu.memory_space<vmem>>, %arg9: memref<8x64xf32, #tpu.memory_space<vmem>>) attributes {dimension_semantics = [#tpu.dimension_semantics<arbitrary>], iteration_bounds = array<i64: 16>, scalar_prefetch = 0 : i64, scratch_operands = 2 : i64, tpu.core_type = #tpu.core_type<tc>, window_params = [{transform_indices = @transform_0, window_bounds = array<i64: 1, 8, 64>}, {pipeline_mode = #tpu.pipeline_mode<synchronous>, transform_indices = @transform_1, window_bounds = array<i64: 8, 64>}, {pipeline_mode = #tpu.pipeline_mode<synchronous>, transform_indices = @transform_2, window_bounds = array<i64: 8, 64>}, {pipeline_mode = #tpu.pipeline_mode<synchronous>, transform_indices = @transform_3, window_bounds = array<i64: 64, 512>}, {pipeline_mode = #tpu.pipeline_mode<synchronous>, transform_indices = @transform_4, window_bounds = array<i64: 64, 512>}, {pipeline_mode = #tpu.pipeline_mode<synchronous>, transform_indices = @transform_5, window_bounds = array<i64: 1, 512>}, {transform_indices = @transform_6, window_bounds = array<i64: 1, 8, 128>}]} {
    %c0_i32 = arith.constant 0 : i32
    %0 = arith.cmpi eq, %arg0, %c0_i32 : i32
    %1 = arith.extui %0 : i1 to i32
    %c0_i32_0 = arith.constant 0 : i32
    %2 = arith.cmpi ne, %1, %c0_i32_0 : i32
    scf.if %2 {
      %c0_22 = arith.constant 0 : index
      %c0_23 = arith.constant 0 : index
      %35 = vector.load %arg2[%c0_22, %c0_23] : memref<8x64xf32, #tpu.memory_space<vmem>>, vector<8x64xf32>
      %c0_24 = arith.constant 0 : index
      %c0_25 = arith.constant 0 : index
      %36 = vector.load %arg8[%c0_24, %c0_25] : memref<8x64xf32, #tpu.memory_space<vmem>>, vector<8x64xf32>
      tpu.vector_store %arg8[%c0_24, %c0_25], %35 {strides = array<i32>} : memref<8x64xf32, #tpu.memory_space<vmem>>, vector<8x64xf32>,
      %c0_26 = arith.constant 0 : index
      %c0_27 = arith.constant 0 : index
      %37 = vector.load %arg3[%c0_26, %c0_27] : memref<8x64xf32, #tpu.memory_space<vmem>>, vector<8x64xf32>
      %c0_28 = arith.constant 0 : index
      %c0_29 = arith.constant 0 : index
      %38 = vector.load %arg9[%c0_28, %c0_29] : memref<8x64xf32, #tpu.memory_space<vmem>>, vector<8x64xf32>
      tpu.vector_store %arg9[%c0_28, %c0_29], %37 {strides = array<i32>} : memref<8x64xf32, #tpu.memory_space<vmem>>, vector<8x64xf32>,
    } else {
    }
    %c0 = arith.constant 0 : index
    %c0_1 = arith.constant 0 : index
    %c0_2 = arith.constant 0 : index
    %3 = vector.load %arg1[%c0, %c0_1, %c0_2] : memref<1x8x64xf32, #tpu.memory_space<vmem>>, vector<1x8x64xf32>
    %4 = vector.shape_cast %3 : vector<1x8x64xf32> to vector<8x64xf32>
    %c0_3 = arith.constant 0 : index
    %c0_4 = arith.constant 0 : index
    %5 = vector.load %arg9[%c0_3, %c0_4] : memref<8x64xf32, #tpu.memory_space<vmem>>, vector<8x64xf32>
    %c0_5 = arith.constant 0 : index
    %c0_6 = arith.constant 0 : index
    %6 = vector.load %arg8[%c0_5, %c0_6] : memref<8x64xf32, #tpu.memory_space<vmem>>, vector<8x64xf32>
    %c0_7 = arith.constant 0 : index
    %c0_8 = arith.constant 0 : index
    %7 = vector.load %arg4[%c0_7, %c0_8] : memref<64x512xf32, #tpu.memory_space<vmem>>, vector<64x512xf32>
    %cst = arith.constant dense<0.000000e+00> : vector<8x512xf32>
    %8 = tpu.matmul %4, %7, %cst {dimension_numbers = #tpu.dot_dimension_numbers<[1], [0], [0], [1], [0, 0, 1, 1], [], []>} : vector<8x64xf32>, vector<64x512xf32>, vector<8x512xf32> -> vector<8x512xf32>
    %c0_9 = arith.constant 0 : index
    %c0_10 = arith.constant 0 : index
    %9 = vector.load %arg5[%c0_9, %c0_10] : memref<64x512xf32, #tpu.memory_space<vmem>>, vector<64x512xf32>
    %cst_11 = arith.constant dense<0.000000e+00> : vector<8x512xf32>
    %10 = tpu.matmul %5, %9, %cst_11 {dimension_numbers = #tpu.dot_dimension_numbers<[1], [0], [0], [1], [0, 0, 1, 1], [], []>} : vector<8x64xf32>, vector<64x512xf32>, vector<8x512xf32> -> vector<8x512xf32>
    %11 = arith.addf %8, %10 : vector<8x512xf32>
    %c0_12 = arith.constant 0 : index
    %c0_13 = arith.constant 0 : index
    %12 = vector.load %arg6[%c0_12, %c0_13] : memref<1x512xf32, #tpu.memory_space<vmem>>, vector<1x512xf32>
    %13 = vector.broadcast %12 : vector<1x512xf32> to vector<8x512xf32>
    %14 = arith.addf %11, %13 : vector<8x512xf32>
    %15 = arith.negf %14 : vector<8x512xf32>
    %16 = math.exp %15 : vector<8x512xf32>
    %cst_14 = arith.constant 1.000000e+00 : f32
    %17 = vector.broadcast %cst_14 : f32 to vector<8x512xf32>
    %18 = arith.addf %17, %16 : vector<8x512xf32>
    %19 = arith.divf %17, %18 : vector<8x512xf32>
    %20 = vector.extract_strided_slice %19 {offsets = [0, 0], sizes = [8, 64], strides = [1, 1]} : vector<8x512xf32> to vector<8x64xf32>
    %21 = vector.extract_strided_slice %19 {offsets = [0, 128], sizes = [8, 64], strides = [1, 1]} : vector<8x512xf32> to vector<8x64xf32>
    %22 = vector.extract_strided_slice %19 {offsets = [0, 256], sizes = [8, 64], strides = [1, 1]} : vector<8x512xf32> to vector<8x64xf32>
    %23 = vector.extract_strided_slice %19 {offsets = [0, 384], sizes = [8, 64], strides = [1, 1]} : vector<8x512xf32> to vector<8x64xf32>
    %24 = arith.mulf %22, %6 : vector<8x64xf32>
    %25 = arith.mulf %20, %21 : vector<8x64xf32>
    %26 = arith.addf %24, %25 : vector<8x64xf32>
    %27 = math.tanh %26 : vector<8x64xf32>
    %28 = arith.mulf %23, %27 : vector<8x64xf32>
    %c0_15 = arith.constant 0 : index
    %c0_16 = arith.constant 0 : index
    %29 = vector.load %arg8[%c0_15, %c0_16] : memref<8x64xf32, #tpu.memory_space<vmem>>, vector<8x64xf32>
    tpu.vector_store %arg8[%c0_15, %c0_16], %26 {strides = array<i32>} : memref<8x64xf32, #tpu.memory_space<vmem>>, vector<8x64xf32>,
    %c0_17 = arith.constant 0 : index
    %c0_18 = arith.constant 0 : index
    %30 = vector.load %arg9[%c0_17, %c0_18] : memref<8x64xf32, #tpu.memory_space<vmem>>, vector<8x64xf32>
    tpu.vector_store %arg9[%c0_17, %c0_18], %28 {strides = array<i32>} : memref<8x64xf32, #tpu.memory_space<vmem>>, vector<8x64xf32>,
    %31 = tpu.concatenate %28, %26 in 1 : vector<8x64xf32>, vector<8x64xf32> -> vector<8x128xf32>
    %c0_19 = arith.constant 0 : index
    %c0_20 = arith.constant 0 : index
    %c0_21 = arith.constant 0 : index
    %32 = vector.load %arg7[%c0_19, %c0_20, %c0_21] : memref<1x8x128xf32, #tpu.memory_space<vmem>>, vector<1x8x128xf32>
    %33 = vector.shape_cast %32 : vector<1x8x128xf32> to vector<8x128xf32>
    %34 = vector.shape_cast %31 : vector<8x128xf32> to vector<1x8x128xf32>
    tpu.vector_store %arg7[%c0_19, %c0_20, %c0_21], %34 {strides = array<i32>} : memref<1x8x128xf32, #tpu.memory_space<vmem>>, vector<1x8x128xf32>,
    return
  }
  func.func @transform_0(%arg0: i32) -> (i32, i32, i32) {
    %c0_i32 = arith.constant 0 : i32
    %c0_i32_0 = arith.constant 0 : i32
    %c0_i32_1 = arith.constant 0 : i32
    return %arg0, %c0_i32, %c0_i32_0 : i32, i32, i32
  }
  func.func @transform_1(%arg0: i32) -> (i32, i32) {
    %c0_i32 = arith.constant 0 : i32
    %c0_i32_0 = arith.constant 0 : i32
    %c0_i32_1 = arith.constant 0 : i32
    return %c0_i32, %c0_i32_0 : i32, i32
  }
  func.func @transform_2(%arg0: i32) -> (i32, i32) {
    %c0_i32 = arith.constant 0 : i32
    %c0_i32_0 = arith.constant 0 : i32
    %c0_i32_1 = arith.constant 0 : i32
    return %c0_i32, %c0_i32_0 : i32, i32
  }
  func.func @transform_3(%arg0: i32) -> (i32, i32) {
    %c0_i32 = arith.constant 0 : i32
    %c0_i32_0 = arith.constant 0 : i32
    %c0_i32_1 = arith.constant 0 : i32
    return %c0_i32, %c0_i32_0 : i32, i32
  }
  func.func @transform_4(%arg0: i32) -> (i32, i32) {
    %c0_i32 = arith.constant 0 : i32
    %c0_i32_0 = arith.constant 0 : i32
    %c0_i32_1 = arith.constant 0 : i32
    return %c0_i32, %c0_i32_0 : i32, i32
  }
  func.func @transform_5(%arg0: i32) -> (i32, i32) {
    %c0_i32 = arith.constant 0 : i32
    %c0_i32_0 = arith.constant 0 : i32
    %c0_i32_1 = arith.constant 0 : i32
    return %c0_i32, %c0_i32_0 : i32, i32
  }
  func.func @transform_6(%arg0: i32) -> (i32, i32, i32) {
    %c0_i32 = arith.constant 0 : i32
    %c0_i32_0 = arith.constant 0 : i32
    %c0_i32_1 = arith.constant 0 : i32
    return %arg0, %c0_i32, %c0_i32_0 : i32, i32, i32
  }
}

</mosaic_0001>

<llo_original>
// kernel: tpu_custom_call.1
$region0: #{tpu_custom_call.1}
  #allocation0 [shape = 'u32[]', space=smem, size = 0x4, offset = 0x4, fixed_abs, tag = 'smem constant byte address 0x4 - core index']
  #allocation1 [shape = 'u32[72,128]{1,0:T(1,128)}', space=vmem, size = 0x9000, scoped, tag = 'internal scratch']
  #allocation2 [shape = 'f32[8,64]{1,0:T(8,128)}', space=vmem, size = 0x1000, scoped, tag = 'scratch operand']
  #allocation3 [shape = 'f32[8,64]{1,0:T(8,128)}', space=vmem, size = 0x1000, scoped, tag = 'scratch operand']
  %s0 = inlined_call_operand.hbm [shape: f32[16,8,64], index: 0, kind: input, shape index: {}]
  %s1 = inlined_call_operand.hbm [shape: f32[8,64], index: 1, kind: input, shape index: {}]
  %s2 = inlined_call_operand.hbm [shape: f32[8,64], index: 2, kind: input, shape index: {}]
  %s3 = inlined_call_operand.hbm [shape: f32[64,512], index: 3, kind: input, shape index: {}]
  %s4 = inlined_call_operand.hbm [shape: f32[64,512], index: 4, kind: input, shape index: {}]
  %s5 = inlined_call_operand.vmem [shape: f32[1,512], index: 5, kind: input, shape index: {}]
  %s6 = inlined_call_operand.hbm [shape: f32[16,8,128], index: 6, kind: output, shape index: {}]
  %s7 = sld [smem:[#allocation0]]
  $region81: #{tpu_custom_call.1} parent=0
    _
  %s9 = ssub.s32 1, %s7
  %s10 = scalar_select 0, %s9, %s7
  $region1: #{tpu_custom_call.1} parent=0
    #allocation4 [shape = 'u8[8192]{0}', space=vmem, size = 0x2000, scoped, tag = 'input window, operand 0']
    #allocation5 [shape = 's32[2]{0}', space=sflag, size = 0x8, scoped, tag = 'scoped memory for tpu_custom_call.1']
    #allocation6 [shape = 's32[2]{0}', space=sflag, size = 0x8, scoped, tag = 'scoped memory for tpu_custom_call.1']
    #allocation7 [shape = 'u8[4096]{0}', space=vmem, size = 0x1000, scoped, tag = 'input window, operand 1, single buffered']
    #allocation8 [shape = 's32[1]{0}', space=sflag, size = 0x4, scoped, tag = 'scoped memory for tpu_custom_call.1']
    #allocation9 [shape = 'u8[4096]{0}', space=vmem, size = 0x1000, scoped, tag = 'input window, operand 2, single buffered']
    #allocation10 [shape = 'u8[131072]{0}', space=vmem, size = 0x20000, scoped, tag = 'input window, operand 3, single buffered']
    #allocation11 [shape = 's32[1]{0}', space=sflag, size = 0x4, scoped, tag = 'scoped memory for tpu_custom_call.1']
    #allocation12 [shape = 'u8[131072]{0}', space=vmem, size = 0x20000, scoped, tag = 'input window, operand 4, single buffered']
    #allocation13 [shape = 'u8[8192]{0}', space=vmem, size = 0x2000, scoped, tag = 'output window, operand 0']
    %11 = vsyncpa [#allocation5], 0
    %s12 = scalar_lea.sflag [#allocation5], 1
    %13 = vsyncpa %s12, 0
    %14 = vsyncpa [#allocation8], 0
    %15 = vsyncpa [#allocation11], 0
    %16 = vsyncpa [#allocation6], 0
    %s17 = scalar_lea.sflag [#allocation6], 1
    %18 = vsyncpa %s17, 0
    loop: start=0, step=1, limit=18
    $region2: #{tpu_custom_call.1} parent=1 // loop_pre_header
      _
    $region3: #{tpu_custom_call.1} parent=1 // loop_header
      %s20 = sphi 0, %s24
      %p21 = scmp.ge.s32.totalorder %s20, 18
      %s30 = sphi 0, %s32
      %s33 = sphi 0, %s30
      %s34 = sphi 0, %s33
      %s50 = sphi 0, %s34
      %s54 = sphi 0, %s54
      %s56 = sphi 0, %s54
      %s57 = sphi 0, %s56
      %s71 = sphi 0, %s57
      %s75 = sphi 0, %s75
      %s77 = sphi 0, %s75
      %s78 = sphi 0, %s77
      %s92 = sphi 0, %s78
      %s96 = sphi 0, %s96
      %s98 = sphi 0, %s96
      %s99 = sphi 0, %s98
      %s113 = sphi 0, %s99
      %s117 = sphi 0, %s117
      %s119 = sphi 0, %s117
      %s120 = sphi 0, %s119
      %s134 = sphi 0, %s120
      %s138 = sphi 0, %s138
      %s140 = sphi 0, %s138
      %s141 = sphi 0, %s140
      %s155 = sphi 0, %s141
      %s161 = sphi 0, %s163
      %s164 = sphi 0, %s161
      %s165 = sphi 0, %s164
      %s181 = sphi 0, %s165
    $region4: #{tpu_custom_call.1} parent=1 // loop_header_branch
      %23 = sbr.rel (%p21) target = $region8
    $region5: #{tpu_custom_call.1} parent=1 // loop_body
      %s25 = ssub.s32 %s20, 1
      %s26 = ssub.s32 %s20, 2
      %s27 = sadd.s32 %s20, 1
      %s28 = ssub.s32 %s20, %s27
      %p29 = scmp.eq.s32.totalorder %s28, 0
      %s31 = sadd.s32 %s30, 1
      %s32 = scalar_select %p29, %s30, %s31
      %p35 = pneg %p29
      %p36 = scmp.eq.s32.totalorder %s20, 15
      %p37 = por %p35, %p36
      %p38 = scmp.ne.s32.totalorder %s30, %s33
      %p39 = scmp.eq.s32.totalorder %s20, 0
      %p40 = por %p38, %p39
      %p41 = scmp.ne.s32.totalorder %s30, %s33
      %p42 = scmp.eq.s32.totalorder %s25, 15
      %p43 = por %p41, %p42
      %p44 = scmp.ne.s32.totalorder %s33, %s34
      %p45 = scmp.eq.s32.totalorder %s25, 0
      %p46 = por %p44, %p45
      %p47 = scmp.ne.s32.totalorder %s33, %s34
      %p48 = scmp.eq.s32.totalorder %s26, 15
      %p49 = por %p47, %p48
      %p51 = scmp.ne.s32.totalorder %s34, %s50
      %p52 = scmp.eq.s32.totalorder %s26, 0
      %p53 = por %p51, %p52
      %s55 = sadd.s32 %s54, 1
      %p58 = scmp.eq.s32.totalorder %s20, 15
      %p59 = scmp.ne.s32.totalorder %s54, %s56
      %p60 = scmp.eq.s32.totalorder %s20, 0
      %p61 = por %p59, %p60
      %p62 = scmp.ne.s32.totalorder %s54, %s56
      %p63 = scmp.eq.s32.totalorder %s25, 15
      %p64 = por %p62, %p63
      %p65 = scmp.ne.s32.totalorder %s56, %s57
      %p66 = scmp.eq.s32.totalorder %s25, 0
      %p67 = por %p65, %p66
      %p68 = scmp.ne.s32.totalorder %s56, %s57
      %p69 = scmp.eq.s32.totalorder %s26, 15
      %p70 = por %p68, %p69
      %p72 = scmp.ne.s32.totalorder %s57, %s71
      %p73 = scmp.eq.s32.totalorder %s26, 0
      %p74 = por %p72, %p73
      %s76 = sadd.s32 %s75, 1
      %p79 = scmp.eq.s32.totalorder %s20, 15
      %p80 = scmp.ne.s32.totalorder %s75, %s77
      %p81 = scmp.eq.s32.totalorder %s20, 0
      %p82 = por %p80, %p81
      %p83 = scmp.ne.s32.totalorder %s75, %s77
      %p84 = scmp.eq.s32.totalorder %s25, 15
      %p85 = por %p83, %p84
      %p86 = scmp.ne.s32.totalorder %s77, %s78
      %p87 = scmp.eq.s32.totalorder %s25, 0
      %p88 = por %p86, %p87
      %p89 = scmp.ne.s32.totalorder %s77, %s78
      %p90 = scmp.eq.s32.totalorder %s26, 15
      %p91 = por %p89, %p90
      %p93 = scmp.ne.s32.totalorder %s78, %s92
      %p94 = scmp.eq.s32.totalorder %s26, 0
      %p95 = por %p93, %p94
      %s97 = sadd.s32 %s96, 1
      %p100 = scmp.eq.s32.totalorder %s20, 15
      %p101 = scmp.ne.s32.totalorder %s96, %s98
      %p102 = scmp.eq.s32.totalorder %s20, 0
      %p103 = por %p101, %p102
      %p104 = scmp.ne.s32.totalorder %s96, %s98
      %p105 = scmp.eq.s32.totalorder %s25, 15
      %p106 = por %p104, %p105
      %p107 = scmp.ne.s32.totalorder %s98, %s99
      %p108 = scmp.eq.s32.totalorder %s25, 0
      %p109 = por %p107, %p108
      %p110 = scmp.ne.s32.totalorder %s98, %s99
      %p111 = scmp.eq.s32.totalorder %s26, 15
      %p112 = por %p110, %p111
      %p114 = scmp.ne.s32.totalorder %s99, %s113
      %p115 = scmp.eq.s32.totalorder %s26, 0
      %p116 = por %p114, %p115
      %s118 = sadd.s32 %s117, 1
      %p121 = scmp.eq.s32.totalorder %s20, 15
      %p122 = scmp.ne.s32.totalorder %s117, %s119
      %p123 = scmp.eq.s32.totalorder %s20, 0
      %p124 = por %p122, %p123
      %p125 = scmp.ne.s32.totalorder %s117, %s119
      %p126 = scmp.eq.s32.totalorder %s25, 15
      %p127 = por %p125, %p126
      %p128 = scmp.ne.s32.totalorder %s119, %s120
      %p129 = scmp.eq.s32.totalorder %s25, 0
      %p130 = por %p128, %p129
      %p131 = scmp.ne.s32.totalorder %s119, %s120
      %p132 = scmp.eq.s32.totalorder %s26, 15
      %p133 = por %p131, %p132
      %p135 = scmp.ne.s32.totalorder %s120, %s134
      %p136 = scmp.eq.s32.totalorder %s26, 0
      %p137 = por %p135, %p136
      %s139 = sadd.s32 %s138, 1
      %p142 = scmp.eq.s32.totalorder %s20, 15
      %p143 = scmp.ne.s32.totalorder %s138, %s140
      %p144 = scmp.eq.s32.totalorder %s20, 0
      %p145 = por %p143, %p144
      %p146 = scmp.ne.s32.totalorder %s138, %s140
      %p147 = scmp.eq.s32.totalorder %s25, 15
      %p148 = por %p146, %p147
      %p149 = scmp.ne.s32.totalorder %s140, %s141
      %p150 = scmp.eq.s32.totalorder %s25, 0
      %p151 = por %p149, %p150
      %p152 = scmp.ne.s32.totalorder %s140, %s141
      %p153 = scmp.eq.s32.totalorder %s26, 15
      %p154 = por %p152, %p153
      %p156 = scmp.ne.s32.totalorder %s141, %s155
      %p157 = scmp.eq.s32.totalorder %s26, 0
      %p158 = por %p156, %p157
      %s159 = ssub.s32 %s20, %s27
      %p160 = scmp.eq.s32.totalorder %s159, 0
      %s162 = sadd.s32 %s161, 1
      %s163 = scalar_select %p160, %s161, %s162
      %p166 = pneg %p160
      %p167 = scmp.eq.s32.totalorder %s20, 15
      %p168 = por %p166, %p167
      %p169 = scmp.ne.s32.totalorder %s161, %s164
      %p170 = scmp.eq.s32.totalorder %s20, 0
      %p171 = por %p169, %p170
      %p172 = scmp.ne.s32.totalorder %s161, %s164
      %p173 = scmp.eq.s32.totalorder %s25, 15
      %p174 = por %p172, %p173
      %p175 = scmp.ne.s32.totalorder %s164, %s165
      %p176 = scmp.eq.s32.totalorder %s25, 0
      %p177 = por %p175, %p176
      %p178 = scmp.ne.s32.totalorder %s164, %s165
      %p179 = scmp.eq.s32.totalorder %s26, 15
      %p180 = por %p178, %p179
      %p182 = scmp.ne.s32.totalorder %s165, %s181
      %p183 = scmp.eq.s32.totalorder %s26, 0
      %p184 = por %p182, %p183
      %p185 = scmp.le.s32.totalorder 1, %s20
      %p186 = scmp.lt.s32.totalorder %s20, 17
      %p187 = pnand %p185, %p186
      %p188 = pneg %p187
      // Predicated region
      $region9: #{tpu_custom_call.1} parent=5 // pred_check
        _
      $region10: #{tpu_custom_call.1} parent=5 // pred_check_branch
        %190 = sbr.rel (%p187) target = $region12
      $region11: #{tpu_custom_call.1} parent=5 // pred_region
        %s191 = ssub.s32 %s20, 1
        // Predicated region
        $region13: #{tpu_custom_call.1} parent=11 // pred_check
          %p192 = pneg %p67
        $region14: #{tpu_custom_call.1} parent=11 // pred_check_branch
          %194 = sbr.rel (%p192) target = $region16
        $region15: #{tpu_custom_call.1} parent=11 // pred_region
          %196 = vsyncadd [#allocation8], 0
          %s198 = sshll.u32 %s1, 4
          %s199 = int_to_ptr.hbm [resolvable:$true] %s198
          %s200 = sshll.u32 [#allocation7], 4
          %s201 = int_to_ptr.vmem [resolvable:$true] %s200
          %203 = dma.hbm_to_vmem [thread:$0]  %s199, 128, %s201, [#allocation8]
        $region16: #{tpu_custom_call.1} parent=11 // pred_fallthru
          _
        // Predicated region
        $region17: #{tpu_custom_call.1} parent=11 // pred_check
          %p204 = pneg %p88
        $region18: #{tpu_custom_call.1} parent=11 // pred_check_branch
          %206 = sbr.rel (%p204) target = $region20
        $region19: #{tpu_custom_call.1} parent=11 // pred_region
          %208 = vsyncadd [#allocation8], 0
          %s210 = sshll.u32 %s2, 4
          %s211 = int_to_ptr.hbm [resolvable:$true] %s210
          %s212 = sshll.u32 [#allocation9], 4
          %s213 = int_to_ptr.vmem [resolvable:$true] %s212
          %215 = dma.hbm_to_vmem [thread:$0]  %s211, 128, %s213, [#allocation8]
        $region20: #{tpu_custom_call.1} parent=11 // pred_fallthru
          _
        // Predicated region
        $region21: #{tpu_custom_call.1} parent=11 // pred_check
          %p216 = pneg %p109
        $region22: #{tpu_custom_call.1} parent=11 // pred_check_branch
          %218 = sbr.rel (%p216) target = $region24
        $region23: #{tpu_custom_call.1} parent=11 // pred_region
          %220 = vsyncadd [#allocation11], 0
          %s221 = sshll.u32 %s3, 4
          %s222 = int_to_ptr.hbm [resolvable:$true] %s221
          %s223 = sshll.u32 [#allocation10], 4
          %s224 = int_to_ptr.vmem [resolvable:$true] %s223
          %229 = dma.hbm_to_vmem [thread:$0]  %s222, 4096, %s224, [#allocation11], 512, 512, 32
        $region24: #{tpu_custom_call.1} parent=11 // pred_fallthru
          _
        // Predicated region
        $region25: #{tpu_custom_call.1} parent=11 // pred_check
          %p230 = pneg %p130
        $region26: #{tpu_custom_call.1} parent=11 // pred_check_branch
          %232 = sbr.rel (%p230) target = $region28
        $region27: #{tpu_custom_call.1} parent=11 // pred_region
          %234 = vsyncadd [#allocation11], 0
          %s235 = sshll.u32 %s4, 4
          %s236 = int_to_ptr.hbm [resolvable:$true] %s235
          %s237 = sshll.u32 [#allocation12], 4
          %s238 = int_to_ptr.vmem [resolvable:$true] %s237
          %243 = dma.hbm_to_vmem [thread:$0]  %s236, 4096, %s238, [#allocation11], 512, 512, 32
        $region28: #{tpu_custom_call.1} parent=11 // pred_fallthru
          _
        // Predicated region
        $region29: #{tpu_custom_call.1} parent=11 // pred_check
          %p244 = pneg %p151
        $region30: #{tpu_custom_call.1} parent=11 // pred_check_branch
          %246 = sbr.rel (%p244) target = $region32
        $region31: #{tpu_custom_call.1} parent=11 // pred_region
          _
        $region32: #{tpu_custom_call.1} parent=11 // pred_fallthru
          _
      $region12: #{tpu_custom_call.1} parent=5 // pred_fallthru
        _
      %p247 = scmp.lt.s32.totalorder %s20, 16
      // Predicated region
      $region33: #{tpu_custom_call.1} parent=5 // pred_check
        %p248 = pneg %p247
      $region34: #{tpu_custom_call.1} parent=5 // pred_check_branch
        %250 = sbr.rel (%p248) target = $region36
      $region35: #{tpu_custom_call.1} parent=5 // pred_region
        // Predicated region
        $region37: #{tpu_custom_call.1} parent=35 // pred_check
          %p251 = pneg %p40
        $region38: #{tpu_custom_call.1} parent=35 // pred_check_branch
          %253 = sbr.rel (%p251) target = $region40
        $region39: #{tpu_custom_call.1} parent=35 // pred_region
          %s254 = sand.u32 %s30, 1
          %s255 = scalar_lea.sflag [#allocation5], %s254
          %s256 = sand.u32 %s30, 1
          %s257 = smul.addr %s256, 8
          %s258 = scalar_lea.vmem [#allocation4], %s257
          %260 = vsyncadd %s255, 0
          %s261 = smul.addr %s20, 8
          %s262 = scalar_lea.hbm %s0, %s261
          %s264 = sshll.u32 %s262, 4
          %s265 = int_to_ptr.hbm [resolvable:$true] %s264
          %s266 = sshll.u32 %s258, 4
          %s267 = int_to_ptr.vmem [resolvable:$true] %s266
          %269 = dma.hbm_to_vmem [thread:$0]  %s265, 128, %s267, %s255
        $region40: #{tpu_custom_call.1} parent=35 // pred_fallthru
          _
      $region36: #{tpu_custom_call.1} parent=5 // pred_fallthru
        _
      %p270 = scmp.le.s32.totalorder 1, %s20
      %p271 = scmp.lt.s32.totalorder %s20, 17
      %p272 = pnand %p270, %p271
      %p273 = pneg %p272
      // Predicated region
      $region41: #{tpu_custom_call.1} parent=5 // pred_check
        _
      $region42: #{tpu_custom_call.1} parent=5 // pred_check_branch
        %275 = sbr.rel (%p272) target = $region44
      $region43: #{tpu_custom_call.1} parent=5 // pred_region
        %s276 = ssub.s32 %s20, 1
        %s277 = sand.u32 %s33, 1
        %s278 = scalar_lea.sflag [#allocation5], %s277
        %s279 = sand.u32 %s33, 1
        %s280 = smul.addr %s279, 8
        %s281 = scalar_lea.vmem [#allocation4], %s280
        // Predicated region
        $region45: #{tpu_custom_call.1} parent=43 // pred_check
          %p282 = pneg %p46
        $region46: #{tpu_custom_call.1} parent=43 // pred_check_branch
          %284 = sbr.rel (%p282) target = $region48
        $region47: #{tpu_custom_call.1} parent=43 // pred_region
          %286 = dma.done %s278, 128
        $region48: #{tpu_custom_call.1} parent=43 // pred_fallthru
          _
        // Predicated region
        $region49: #{tpu_custom_call.1} parent=43 // pred_check
          %p287 = pneg %p67
        $region50: #{tpu_custom_call.1} parent=43 // pred_check_branch
          %289 = sbr.rel (%p287) target = $region52
        $region51: #{tpu_custom_call.1} parent=43 // pred_region
          %291 = dma.done [#allocation8], 128
        $region52: #{tpu_custom_call.1} parent=43 // pred_fallthru
          _
        // Predicated region
        $region53: #{tpu_custom_call.1} parent=43 // pred_check
          %p292 = pneg %p88
        $region54: #{tpu_custom_call.1} parent=43 // pred_check_branch
          %294 = sbr.rel (%p292) target = $region56
        $region55: #{tpu_custom_call.1} parent=43 // pred_region
          %296 = dma.done [#allocation8], 128
        $region56: #{tpu_custom_call.1} parent=43 // pred_fallthru
          _
        // Predicated region
        $region57: #{tpu_custom_call.1} parent=43 // pred_check
          %p297 = pneg %p109
        $region58: #{tpu_custom_call.1} parent=43 // pred_check_branch
          %299 = sbr.rel (%p297) target = $region60
        $region59: #{tpu_custom_call.1} parent=43 // pred_region
          %301 = dma.done [#allocation11], 4096
        $region60: #{tpu_custom_call.1} parent=43 // pred_fallthru
          _
        // Predicated region
        $region61: #{tpu_custom_call.1} parent=43 // pred_check
          %p302 = pneg %p130
        $region62: #{tpu_custom_call.1} parent=43 // pred_check_branch
          %304 = sbr.rel (%p302) target = $region64
        $region63: #{tpu_custom_call.1} parent=43 // pred_region
          %306 = dma.done [#allocation11], 4096
        $region64: #{tpu_custom_call.1} parent=43 // pred_fallthru
          _
        %s307 = sand.u32 %s33, 1
        %s308 = scalar_lea.sflag [#allocation5], %s307
        %s309 = sand.u32 %s33, 1
        %s310 = smul.addr %s309, 8
        %s311 = scalar_lea.vmem [#allocation4], %s310
        %p312 = pneg %p46
        %p313 = pneg %p43
        %p314 = pneg %p67
        %p315 = pneg %p64
        %p316 = pneg %p88
        %p317 = pneg %p85
        %p318 = pneg %p109
        %p319 = pneg %p106
        %p320 = pneg %p130
        %p321 = pneg %p127
        %p322 = pneg %p151
        %p323 = pneg %p148
        %p324 = pneg %p177
        %p325 = pneg %p174
        %s326 = sand.u32 %s164, 1
        %s327 = scalar_lea.sflag [#allocation6], %s326
        %s328 = sand.u32 %s164, 1
        %s329 = smul.addr %s328, 8
        %s330 = scalar_lea.vmem [#allocation13], %s329
        %p331 = scmp.eq.s32.totalorder %s25, 0
        // Predicated region
        $region65: #{tpu_custom_call.1} parent=43 // pred_check
          %p332 = pneg %p331
        $region66: #{tpu_custom_call.1} parent=43 // pred_check_branch
          %334 = sbr.rel (%p332) target = $region68
        $region67: #{tpu_custom_call.1} parent=43 // pred_region
          %v335 = vld [vmem:[#allocation7] sm:$0xff]
          %vm336 = vcmask 523264
          %337 = vst.msk [vmem:[#allocation2] sm:$0xff] %vm336, %v335
          %v338 = vld [vmem:[#allocation9] sm:$0xff]
          %339 = vst.msk [vmem:[#allocation3] sm:$0xff] %vm336, %v338
        $region68: #{tpu_custom_call.1} parent=43 // pred_fallthru
          _
        %v340 = vld [vmem:[%s281] sm:$0xff]
        %v341 = vld [vmem:[#allocation3] sm:$0xff]
        %v342 = vld [vmem:[#allocation2] sm:$0xff]
        %v343 = vld [vmem:[#allocation10] sm:$0xff]
        %v344 = vld [vmem:[#allocation10 + $0x8] sm:$0xff]
        %v345 = vld [vmem:[#allocation10 + $0x10] sm:$0xff]
        %v346 = vld [vmem:[#allocation10 + $0x18] sm:$0xff]
        %v347 = vld [vmem:[#allocation10 + $0x20] sm:$0xff]
        %v348 = vld [vmem:[#allocation10 + $0x28] sm:$0xff]
        %v349 = vld [vmem:[#allocation10 + $0x30] sm:$0xff]
        %v350 = vld [vmem:[#allocation10 + $0x38] sm:$0xff]
        %v351 = vld [vmem:[#allocation10 + $0x40] sm:$0xff]
        %v352 = vld [vmem:[#allocation10 + $0x48] sm:$0xff]
        %v353 = vld [vmem:[#allocation10 + $0x50] sm:$0xff]
        %v354 = vld [vmem:[#allocation10 + $0x58] sm:$0xff]
        %v355 = vld [vmem:[#allocation10 + $0x60] sm:$0xff]
        %v356 = vld [vmem:[#allocation10 + $0x68] sm:$0xff]
        %v357 = vld [vmem:[#allocation10 + $0x70] sm:$0xff]
        %v358 = vld [vmem:[#allocation10 + $0x78] sm:$0xff]
        %v359 = vld [vmem:[#allocation10 + $0x80] sm:$0xff]
        %v360 = vld [vmem:[#allocation10 + $0x88] sm:$0xff]
        %v361 = vld [vmem:[#allocation10 + $0x90] sm:$0xff]
        %v362 = vld [vmem:[#allocation10 + $0x98] sm:$0xff]
        %v363 = vld [vmem:[#allocation10 + $0xa0] sm:$0xff]
        %v364 = vld [vmem:[#allocation10 + $0xa8] sm:$0xff]
        %v365 = vld [vmem:[#allocation10 + $0xb0] sm:$0xff]
        %v366 = vld [vmem:[#allocation10 + $0xb8] sm:$0xff]
        %v367 = vld [vmem:[#allocation10 + $0xc0] sm:$0xff]
        %v368 = vld [vmem:[#allocation10 + $0xc8] sm:$0xff]
        %v369 = vld [vmem:[#allocation10 + $0xd0] sm:$0xff]
        %v370 = vld [vmem:[#allocation10 + $0xd8] sm:$0xff]
        %v371 = vld [vmem:[#allocation10 + $0xe0] sm:$0xff]
        %v372 = vld [vmem:[#allocation10 + $0xe8] sm:$0xff]
        %v373 = vld [vmem:[#allocation10 + $0xf0] sm:$0xff]
        %v374 = vld [vmem:[#allocation10 + $0xf8] sm:$0xff]
        %v375 = vld [vmem:[#allocation12] sm:$0xff]
        %v376 = vld [vmem:[#allocation12 + $0x8] sm:$0xff]
        %v377 = vld [vmem:[#allocation12 + $0x10] sm:$0xff]
        %v378 = vld [vmem:[#allocation12 + $0x18] sm:$0xff]
        %v379 = vld [vmem:[#allocation12 + $0x20] sm:$0xff]
        %v380 = vld [vmem:[#allocation12 + $0x28] sm:$0xff]
        %v381 = vld [vmem:[#allocation12 + $0x30] sm:$0xff]
        %v382 = vld [vmem:[#allocation12 + $0x38] sm:$0xff]
        %v383 = vld [vmem:[#allocation12 + $0x40] sm:$0xff]
        %v384 = vld [vmem:[#allocation12 + $0x48] sm:$0xff]
        %v385 = vld [vmem:[#allocation12 + $0x50] sm:$0xff]
        %v386 = vld [vmem:[#allocation12 + $0x58] sm:$0xff]
        %v387 = vld [vmem:[#allocation12 + $0x60] sm:$0xff]
        %v388 = vld [vmem:[#allocation12 + $0x68] sm:$0xff]
        %v389 = vld [vmem:[#allocation12 + $0x70] sm:$0xff]
        %v390 = vld [vmem:[#allocation12 + $0x78] sm:$0xff]
        %v391 = vld [vmem:[#allocation12 + $0x80] sm:$0xff]
        %v392 = vld [vmem:[#allocation12 + $0x88] sm:$0xff]
        %v393 = vld [vmem:[#allocation12 + $0x90] sm:$0xff]
        %v394 = vld [vmem:[#allocation12 + $0x98] sm:$0xff]
        %v395 = vld [vmem:[#allocation12 + $0xa0] sm:$0xff]
        %v396 = vld [vmem:[#allocation12 + $0xa8] sm:$0xff]
        %v397 = vld [vmem:[#allocation12 + $0xb0] sm:$0xff]
        %v398 = vld [vmem:[#allocation12 + $0xb8] sm:$0xff]
        %v399 = vld [vmem:[#allocation12 + $0xc0] sm:$0xff]
        %v400 = vld [vmem:[#allocation12 + $0xc8] sm:$0xff]
        %v401 = vld [vmem:[#allocation12 + $0xd0] sm:$0xff]
        %v402 = vld [vmem:[#allocation12 + $0xd8] sm:$0xff]
        %v403 = vld [vmem:[#allocation12 + $0xe0] sm:$0xff]
        %v404 = vld [vmem:[#allocation12 + $0xe8] sm:$0xff]
        %v405 = vld [vmem:[#allocation12 + $0xf0] sm:$0xff]
        %v406 = vld [vmem:[#allocation12 + $0xf8] sm:$0xff]
        %vm407 = vcmask 523264
        %v409 = vsel %vm407, %v341, 0
        %411 = vmatpush.msra.mxu0 0.0
        %412 = vmatpush.msra.mxu0 0.0
        %413 = vmatpush.msra.mxu0 0.0
        %414 = vmatpush.msra.mxu0 0.0
        %415 = vmatpush.msra.mxu0 0.0
        %416 = vmatpush.msra.mxu0 0.0
        %417 = vmatpush.msra.mxu0 0.0
        %418 = vmatpush.msra.mxu0 0.0
        %419 = vmatpush.msra.mxu0 %v403
        %420 = vmatpush.msra.mxu0 %v399
        %421 = vmatpush.msra.mxu0 %v395
        %422 = vmatpush.msra.mxu0 %v391
        %423 = vmatpush.msra.mxu0 %v387
        %424 = vmatpush.msra.mxu0 %v383
        %425 = vmatpush.msra.mxu0 %v379
        %426 = vmatpush.msra.mxu0 %v375
        %427 = vmatmul.f32.gmra.mxu0 %v409
        %v428 = vpop.f32.mrf.mxu0
        %v429 = vadd.f32 0.0, %v428
        %430 = vdwg.mxu0
        %431 = vmatpush.msra.mxu0 0.0
        %432 = vmatpush.msra.mxu0 0.0
        %433 = vmatpush.msra.mxu0 0.0
        %434 = vmatpush.msra.mxu0 0.0
        %435 = vmatpush.msra.mxu0 0.0
        %436 = vmatpush.msra.mxu0 0.0
        %437 = vmatpush.msra.mxu0 0.0
        %438 = vmatpush.msra.mxu0 0.0
        %439 = vmatpush.msra.mxu0 %v404
        %440 = vmatpush.msra.mxu0 %v400
        %441 = vmatpush.msra.mxu0 %v396
        %442 = vmatpush.msra.mxu0 %v392
        %443 = vmatpush.msra.mxu0 %v388
        %444 = vmatpush.msra.mxu0 %v384
        %445 = vmatpush.msra.mxu0 %v380
        %446 = vmatpush.msra.mxu0 %v376
        %447 = vmatmul.f32.gmra.mxu0 %v409
        %v448 = vpop.f32.mrf.mxu0
        %v449 = vadd.f32 0.0, %v448
        %450 = vdwg.mxu0
        %451 = vmatpush.msra.mxu0 0.0
        %452 = vmatpush.msra.mxu0 0.0
        %453 = vmatpush.msra.mxu0 0.0
        %454 = vmatpush.msra.mxu0 0.0
        %455 = vmatpush.msra.mxu0 0.0
        %456 = vmatpush.msra.mxu0 0.0
        %457 = vmatpush.msra.mxu0 0.0
        %458 = vmatpush.msra.mxu0 0.0
        %459 = vmatpush.msra.mxu0 %v405
        %460 = vmatpush.msra.mxu0 %v401
        %461 = vmatpush.msra.mxu0 %v397
        %462 = vmatpush.msra.mxu0 %v393
        %463 = vmatpush.msra.mxu0 %v389
        %464 = vmatpush.msra.mxu0 %v385
        %465 = vmatpush.msra.mxu0 %v381
        %466 = vmatpush.msra.mxu0 %v377
        %467 = vmatmul.f32.gmra.mxu0 %v409
        %v468 = vpop.f32.mrf.mxu0
        %v469 = vadd.f32 0.0, %v468
        %470 = vdwg.mxu0
        %471 = vmatpush.msra.mxu0 0.0
        %472 = vmatpush.msra.mxu0 0.0
        %473 = vmatpush.msra.mxu0 0.0
        %474 = vmatpush.msra.mxu0 0.0
        %475 = vmatpush.msra.mxu0 0.0
        %476 = vmatpush.msra.mxu0 0.0
        %477 = vmatpush.msra.mxu0 0.0
        %478 = vmatpush.msra.mxu0 0.0
        %479 = vmatpush.msra.mxu0 %v406
        %480 = vmatpush.msra.mxu0 %v402
        %481 = vmatpush.msra.mxu0 %v398
        %482 = vmatpush.msra.mxu0 %v394
        %483 = vmatpush.msra.mxu0 %v390
        %484 = vmatpush.msra.mxu0 %v386
        %485 = vmatpush.msra.mxu0 %v382
        %486 = vmatpush.msra.mxu0 %v378
        %487 = vmatmul.f32.gmra.mxu0 %v409
        %v488 = vpop.f32.mrf.mxu0
        %v489 = vadd.f32 0.0, %v488
        %490 = vdwg.mxu0
        %v492 = vsel %vm407, %v340, 0
        %494 = vmatpush.msra.mxu0 0.0
        %495 = vmatpush.msra.mxu0 0.0
        %496 = vmatpush.msra.mxu0 0.0
        %497 = vmatpush.msra.mxu0 0.0
        %498 = vmatpush.msra.mxu0 0.0
        %499 = vmatpush.msra.mxu0 0.0
        %500 = vmatpush.msra.mxu0 0.0
        %501 = vmatpush.msra.mxu0 0.0
        %502 = vmatpush.msra.mxu0 %v371
        %503 = vmatpush.msra.mxu0 %v367
        %504 = vmatpush.msra.mxu0 %v363
        %505 = vmatpush.msra.mxu0 %v359
        %506 = vmatpush.msra.mxu0 %v355
        %507 = vmatpush.msra.mxu0 %v351
        %508 = vmatpush.msra.mxu0 %v347
        %509 = vmatpush.msra.mxu0 %v343
        %510 = vmatmul.f32.gmra.mxu0 %v492
        %v511 = vpop.f32.mrf.mxu0
        %v512 = vadd.f32 %v429, %v511
        %513 = vdwg.mxu0
        %514 = vmatpush.msra.mxu0 0.0
        %515 = vmatpush.msra.mxu0 0.0
        %516 = vmatpush.msra.mxu0 0.0
        %517 = vmatpush.msra.mxu0 0.0
        %518 = vmatpush.msra.mxu0 0.0
        %519 = vmatpush.msra.mxu0 0.0
        %520 = vmatpush.msra.mxu0 0.0
        %521 = vmatpush.msra.mxu0 0.0
        %522 = vmatpush.msra.mxu0 %v372
        %523 = vmatpush.msra.mxu0 %v368
        %524 = vmatpush.msra.mxu0 %v364
        %525 = vmatpush.msra.mxu0 %v360
        %526 = vmatpush.msra.mxu0 %v356
        %527 = vmatpush.msra.mxu0 %v352
        %528 = vmatpush.msra.mxu0 %v348
        %529 = vmatpush.msra.mxu0 %v344
        %530 = vmatmul.f32.gmra.mxu0 %v492
        %v531 = vpop.f32.mrf.mxu0
        %v532 = vadd.f32 %v449, %v531
        %533 = vdwg.mxu0
        %534 = vmatpush.msra.mxu0 0.0
        %535 = vmatpush.msra.mxu0 0.0
        %536 = vmatpush.msra.mxu0 0.0
        %537 = vmatpush.msra.mxu0 0.0
        %538 = vmatpush.msra.mxu0 0.0
        %539 = vmatpush.msra.mxu0 0.0
        %540 = vmatpush.msra.mxu0 0.0
        %541 = vmatpush.msra.mxu0 0.0
        %542 = vmatpush.msra.mxu0 %v373
        %543 = vmatpush.msra.mxu0 %v369
        %544 = vmatpush.msra.mxu0 %v365
        %545 = vmatpush.msra.mxu0 %v361
        %546 = vmatpush.msra.mxu0 %v357
        %547 = vmatpush.msra.mxu0 %v353
        %548 = vmatpush.msra.mxu0 %v349
        %549 = vmatpush.msra.mxu0 %v345
        %550 = vmatmul.f32.gmra.mxu0 %v492
        %v551 = vpop.f32.mrf.mxu0
        %v552 = vadd.f32 %v469, %v551
        %553 = vdwg.mxu0
        %554 = vmatpush.msra.mxu0 0.0
        %555 = vmatpush.msra.mxu0 0.0
        %556 = vmatpush.msra.mxu0 0.0
        %557 = vmatpush.msra.mxu0 0.0
        %558 = vmatpush.msra.mxu0 0.0
        %559 = vmatpush.msra.mxu0 0.0
        %560 = vmatpush.msra.mxu0 0.0
        %561 = vmatpush.msra.mxu0 0.0
        %562 = vmatpush.msra.mxu0 %v374
        %563 = vmatpush.msra.mxu0 %v370
        %564 = vmatpush.msra.mxu0 %v366
        %565 = vmatpush.msra.mxu0 %v362
        %566 = vmatpush.msra.mxu0 %v358
        %567 = vmatpush.msra.mxu0 %v354
        %568 = vmatpush.msra.mxu0 %v350
        %569 = vmatpush.msra.mxu0 %v346
        %570 = vmatmul.f32.gmra.mxu0 %v492
        %v571 = vpop.f32.mrf.mxu0
        %v572 = vadd.f32 %v489, %v571
        %573 = vdwg.mxu0
        %v574 = vld [vmem:[%s5] sm:$0xf]
        %v576 = vperm.slane %v574, 0
        %v577 = vperm.slane %v574, 1
        %v578 = vperm.slane %v574, 2
        %v579 = vperm.slane %v574, 3
        %v584 = vadd.f32 %v512, %v576
        %v585 = vadd.f32 %v532, %v577
        %v586 = vadd.f32 %v552, %v578
        %v587 = vadd.f32 %v572, %v579
        %v588 = vxor.u32 %v584, 2147483648
        %v589 = vxor.u32 %v585, 2147483648
        %v590 = vxor.u32 %v586, 2147483648
        %v591 = vxor.u32 %v587, 2147483648
        %v592 = vmul.f32 %v588, 1.442695
        %v593 = vpow.pop %v592
        %v594 = vmul.f32 %v589, 1.442695
        %v595 = vpow.pop %v594
        %v596 = vmul.f32 %v590, 1.442695
        %v597 = vpow.pop %v596
        %v598 = vmul.f32 %v591, 1.442695
        %v599 = vpow.pop %v598
        %v600 = vadd.f32 %v593, 1.0
        %v601 = vadd.f32 %v595, 1.0
        %v602 = vadd.f32 %v597, 1.0
        %v603 = vadd.f32 %v599, 1.0
        %v604 = vrcp.pop %v600
        %v605 = vmul.f32 %v600, %v604
        %v606 = vsub.f32 1.0, %v605
        %v607 = vmul.f32 %v604, %v606
        %v608 = vadd.f32 %v604, %v607
        %vm609 = vweird.f32 %v600
        %vm610 = vweird.f32 %v604
        %vm611 = vmor %vm609, %vm610
        %v612 = vsel %vm611, %v604, %v608
        %v613 = vand.u32 2147483647, %v600
        %vm614 = vcmp.eq.f32.partialorder %v613, 8.507059e+37
        %v615 = vand.u32 %v600, 2147483648
        %v616 = vor.u32 1.1754944e-38, %v615
        %v617 = vsel %vm614, %v616, %v612
        %v618 = vmul.f32 1.0, %v617
        %v619 = vrcp.pop %v601
        %v620 = vmul.f32 %v601, %v619
        %v621 = vsub.f32 1.0, %v620
        %v622 = vmul.f32 %v619, %v621
        %v623 = vadd.f32 %v619, %v622
        %vm624 = vweird.f32 %v601
        %vm625 = vweird.f32 %v619
        %vm626 = vmor %vm624, %vm625
        %v627 = vsel %vm626, %v619, %v623
        %v628 = vand.u32 2147483647, %v601
        %vm629 = vcmp.eq.f32.partialorder %v628, 8.507059e+37
        %v630 = vand.u32 %v601, 2147483648
        %v631 = vor.u32 1.1754944e-38, %v630
        %v632 = vsel %vm629, %v631, %v627
        %v633 = vmul.f32 1.0, %v632
        %v634 = vrcp.pop %v602
        %v635 = vmul.f32 %v602, %v634
        %v636 = vsub.f32 1.0, %v635
        %v637 = vmul.f32 %v634, %v636
        %v638 = vadd.f32 %v634, %v637
        %vm639 = vweird.f32 %v602
        %vm640 = vweird.f32 %v634
        %vm641 = vmor %vm639, %vm640
        %v642 = vsel %vm641, %v634, %v638
        %v643 = vand.u32 2147483647, %v602
        %vm644 = vcmp.eq.f32.partialorder %v643, 8.507059e+37
        %v645 = vand.u32 %v602, 2147483648
        %v646 = vor.u32 1.1754944e-38, %v645
        %v647 = vsel %vm644, %v646, %v642
        %v648 = vmul.f32 1.0, %v647
        %v649 = vrcp.pop %v603
        %v650 = vmul.f32 %v603, %v649
        %v651 = vsub.f32 1.0, %v650
        %v652 = vmul.f32 %v649, %v651
        %v653 = vadd.f32 %v649, %v652
        %vm654 = vweird.f32 %v603
        %vm655 = vweird.f32 %v649
        %vm656 = vmor %vm654, %vm655
        %v657 = vsel %vm656, %v649, %v653
        %v658 = vand.u32 2147483647, %v603
        %vm659 = vcmp.eq.f32.partialorder %v658, 8.507059e+37
        %v660 = vand.u32 %v603, 2147483648
        %v661 = vor.u32 1.1754944e-38, %v660
        %v662 = vsel %vm659, %v661, %v657
        %v663 = vmul.f32 1.0, %v662
        %v664 = vmul.f32 %v648, %v342
        %v665 = vmul.f32 %v618, %v633
        %v666 = vadd.f32 %v664, %v665
        %v667 = vtanh.pop %v666
        %v668 = vmul.f32 %v663, %v667
        %669 = vst.msk [vmem:[#allocation2] sm:$0xff] %vm407, %v666
        %670 = vst.msk [vmem:[#allocation3] sm:$0xff] %vm407, %v668
        %672 = vrot.lane.b32.xlu0 %v666, 64
        %v673 = vpop.permute.xlu0 %672
        %v675 = vsel %vm407, %v668, %v673
        %676 = vst [vmem:[%s330] sm:$0xff] %v675
        %s677 = sand.u32 %s164, 1
        %s678 = scalar_lea.sflag [#allocation6], %s677
        %s679 = sand.u32 %s164, 1
        %s680 = smul.addr %s679, 8
        %s681 = scalar_lea.vmem [#allocation13], %s680
        // Predicated region
        $region69: #{tpu_custom_call.1} parent=43 // pred_check
          %p682 = pneg %p174
        $region70: #{tpu_custom_call.1} parent=43 // pred_check_branch
          %684 = sbr.rel (%p682) target = $region72
        $region71: #{tpu_custom_call.1} parent=43 // pred_region
          %686 = vsyncadd %s678, 0
          %s687 = smul.addr %s25, 8
          %s688 = scalar_lea.hbm %s6, %s687
          %s690 = sshll.u32 %s681, 4
          %s691 = int_to_ptr.vmem [resolvable:$true] %s690
          %s692 = sshll.u32 %s688, 4
          %s693 = int_to_ptr.hbm [resolvable:$true] %s692
          %695 = dma.vmem_to_hbm [thread:$0]  %s691, 128, %s693, %s678
        $region72: #{tpu_custom_call.1} parent=43 // pred_fallthru
          _
      $region44: #{tpu_custom_call.1} parent=5 // pred_fallthru
        _
      %p696 = scmp.le.s32.totalorder 2, %s20
      // Predicated region
      $region73: #{tpu_custom_call.1} parent=5 // pred_check
        %p697 = pneg %p696
      $region74: #{tpu_custom_call.1} parent=5 // pred_check_branch
        %699 = sbr.rel (%p697) target = $region76
      $region75: #{tpu_custom_call.1} parent=5 // pred_region
        %s700 = ssub.s32 %s20, 2
        // Predicated region
        $region77: #{tpu_custom_call.1} parent=75 // pred_check
          %p701 = pneg %p180
        $region78: #{tpu_custom_call.1} parent=75 // pred_check_branch
          %703 = sbr.rel (%p701) target = $region80
        $region79: #{tpu_custom_call.1} parent=75 // pred_region
          %s704 = sand.u32 %s165, 1
          %s705 = scalar_lea.sflag [#allocation6], %s704
          %s706 = sand.u32 %s165, 1
          %s707 = smul.addr %s706, 8
          %s708 = scalar_lea.vmem [#allocation13], %s707
          %710 = dma.done %s705, 128
        $region80: #{tpu_custom_call.1} parent=75 // pred_fallthru
          _
      $region76: #{tpu_custom_call.1} parent=5 // pred_fallthru
        _
    $region6: #{tpu_custom_call.1} parent=1 // loop_footer
      %s24 = sadd.s32 1, %s20
    $region7: #{tpu_custom_call.1} parent=1 // loop_footer_branch
      %19 = sbr.rel target = $region3
    $region8: #{tpu_custom_call.1} parent=1 // loop_exit
      _
    %711 = vsyncpa [#allocation5], 1
    %s712 = scalar_lea.sflag [#allocation5], 1
    %713 = vsyncpa %s712, 1
    %714 = vsyncpa [#allocation8], 1
    %715 = vsyncpa [#allocation11], 1
    %716 = vsyncpa [#allocation6], 1
    %s717 = scalar_lea.sflag [#allocation6], 1
    %718 = vsyncpa %s717, 1

</llo_original>
